<compile_context>
chip_gen: v7x
topology: tpu7x:2x2x1
jax: 0.10.0
libtpu: 0.0.40
codegen_flags: <defaults>
</compile_context>

<pallas_src>
import jax
import jax.numpy as jnp
from jax.experimental import pallas as pl
from jax.experimental.pallas import tpu as pltpu

OUT_DIM = 4          # policy head output size
OUT_PAD = 128        # lane-dense padded output width
BBLK = 8             # graphs folded per grid step (multiple of 8; 16 for v6e/v7x)


def gnn_policy_kernel(adj_ref, x_ref, arow_ref, w1_ref, b1_ref, w2_ref,
                      b2_ref, w3_ref, b3_ref, out_ref):
    # adj_ref:  (S, S)      bf16  block-diagonal normalized adjacency (BBLK graphs)
    # x_ref:    (S, F_in)   bf16  stacked node features
    # arow_ref: (BBLK, S)   bf16  agent nodes' adjacency rows, block-diag embedded
    # weights bf16, biases f32 (w3/b3 zero-padded to OUT_PAD lanes)

    # --- GCN layer 1 over the whole super-block: relu(A @ (X W1) + b1) -------
    xw = jnp.dot(x_ref[...], w1_ref[...],
                 preferred_element_type=jnp.float32)               # (S, H) f32
    h1 = jnp.dot(adj_ref[...], xw.astype(jnp.bfloat16),
                 preferred_element_type=jnp.float32)               # (S, H) f32
    h1 = jnp.maximum(h1 + b1_ref[...], 0.0)                        # f32 bias/ReLU

    # --- GCN layer 2 restricted to the agent rows (reassociated) -------------
    #   relu(A @ h1 @ W2 + b2)[agent] == relu((A[agent,:] @ h1) @ W2 + b2)
    # valid because row selection commutes with the elementwise ReLU/bias and
    # matmul is associative; drops the full (S,H)@(H,H) matmul.
    agent_h1 = jnp.dot(arow_ref[...], h1.astype(jnp.bfloat16),
                       preferred_element_type=jnp.float32)         # (BBLK, H)
    z = jnp.dot(agent_h1.astype(jnp.bfloat16), w2_ref[...],
                preferred_element_type=jnp.float32) + b2_ref[...]  # (BBLK, H)
    agent = jnp.maximum(z, 0.0)

    # --- policy head (padded to 128 lanes -> unmasked full-tile store) -------
    out_ref[...] = jnp.dot(agent.astype(jnp.bfloat16), w3_ref[...],
                           preferred_element_type=jnp.float32) + b3_ref[...]


def gcn_norm_adj(edge_index, num_nodes):
    """Dense D^{-1/2} (A + I) D^{-1/2}; duplicate edges are summed (PyG gcn_norm)."""
    src, dst = edge_index[0], edge_index[1]
    a = jnp.zeros((num_nodes, num_nodes), jnp.float32).at[dst, src].add(1.0)
    a = a + jnp.eye(num_nodes, dtype=jnp.float32)          # self loops
    deg = a.sum(axis=1)
    dinv = jax.lax.rsqrt(jnp.maximum(deg, 1e-12))
    return dinv[:, None] * a * dinv[None, :]


def gnn_solver_policy_batch(x, edge_index, params, bblk=BBLK):
    """Batched forward.

    x:          (B, N, F_in) f32
    edge_index: (B, 2, E)    int32
    returns     (B, 4)       f32 policy logits per graph.
    """
    B, N, F_in = x.shape
    w1, b1, w2, b2, w3, b3 = params
    H = w1.shape[1]

    # --- pad batch to a multiple of bblk (padded graphs' outputs are sliced off)
    B_pad = ((B + bblk - 1) // bblk) * bblk
    if B_pad != B:
        x = jnp.concatenate(
            [x, jnp.zeros((B_pad - B, N, F_in), x.dtype)], axis=0)
        edge_index = jnp.concatenate(
            [edge_index,
             jnp.zeros((B_pad - B,) + edge_index.shape[1:], edge_index.dtype)],
            axis=0)
    G = B_pad // bblk
    S = bblk * N

    # --- wrapper-side graph preprocessing (cheap at these sizes; cache outside
    #     the hot jit if topologies are static).
    adj = jax.vmap(lambda ei: gcn_norm_adj(ei, N))(edge_index)      # (B_pad,N,N) f32

    # Agent node per graph (PyTorch: (x[:,1]==1.0).nonzero()).
    # TODO(synk): assumes exactly one agent node per graph; with zero/multiple
    # marked nodes this picks the first (argmax) instead of erroring/stacking.
    agent_local = jnp.argmax((x[:, :, 1] == 1.0), axis=1).astype(jnp.int32)
    agent_row = jnp.take_along_axis(
        adj, agent_local[:, None, None], axis=1)[:, 0, :]           # (B_pad, N)

    # Block-diagonal packing: bblk graphs per super-block.
    eye_b = jnp.eye(bblk, dtype=jnp.float32)
    adj_bd = jnp.einsum('gpij,pq->gpiqj',
                        adj.reshape(G, bblk, N, N), eye_b).reshape(G, S, S)
    rows_bd = jnp.einsum('gpn,pq->gpqn',
                         agent_row.reshape(G, bblk, N), eye_b).reshape(G, bblk, S)

    adj_b = adj_bd.astype(jnp.bfloat16)
    rows_b = rows_bd.astype(jnp.bfloat16)
    x_b = x.reshape(G, S, F_in).astype(jnp.bfloat16)

    # bf16 MXU weights, f32 biases; pad the policy head to 128 output lanes.
    w1_b = w1.astype(jnp.bfloat16)
    w2_b = w2.astype(jnp.bfloat16)
    w3_p = jnp.zeros((H, OUT_PAD), jnp.float32).at[:, :OUT_DIM].set(w3)
    w3_b = w3_p.astype(jnp.bfloat16)
    b1_r = b1.reshape(1, H).astype(jnp.float32)
    b2_r = b2.reshape(1, H).astype(jnp.float32)
    b3_p = jnp.zeros((1, OUT_PAD), jnp.float32).at[0, :OUT_DIM].set(b3)

    grid_spec = pltpu.PrefetchScalarGridSpec(
        num_scalar_prefetch=0,
        grid=(G,),
        in_specs=[
            pl.BlockSpec((None, S, S), lambda g: (g, 0, 0)),      # adj (per block)
            pl.BlockSpec((None, S, F_in), lambda g: (g, 0, 0)),   # x   (per block)
            pl.BlockSpec((None, bblk, S), lambda g: (g, 0, 0)),   # agent rows
            pl.BlockSpec((F_in, H), lambda g: (0, 0)),            # w1 (resident)
            pl.BlockSpec((1, H), lambda g: (0, 0)),               # b1
            pl.BlockSpec((H, H), lambda g: (0, 0)),               # w2
            pl.BlockSpec((1, H), lambda g: (0, 0)),               # b2
            pl.BlockSpec((H, OUT_PAD), lambda g: (0, 0)),         # w3 (padded)
            pl.BlockSpec((1, OUT_PAD), lambda g: (0, 0)),         # b3 (padded)
        ],
        out_specs=pl.BlockSpec((bblk, OUT_PAD), lambda g: (g, 0)),
    )

    out = pl.pallas_call(
        gnn_policy_kernel,
        out_shape=jax.ShapeDtypeStruct((B_pad, OUT_PAD), jnp.float32),
        grid_spec=grid_spec,
        compiler_params=pltpu.CompilerParams(
            dimension_semantics=("parallel",)),
    )(adj_b, x_b, rows_b, w1_b, b1_r, w2_b, b2_r, w3_b, b3_p)

    return out[:B, :OUT_DIM]                                       # (B, 4)


def gnn_solver_policy(x, edge_index, params):
    """Single-graph forward matching the PyTorch module (returns (4,) logits)."""
    out = gnn_solver_policy_batch(x[None], edge_index[None], params)
    return out[0]


def reference_forward(x, edge_index, params):
    """Pure-JAX f32 reference matching the PyTorch module."""
    w1, b1, w2, b2, w3, b3 = params
    adj = gcn_norm_adj(edge_index, x.shape[0])
    h = jax.nn.relu(adj @ (x @ w1) + b1)
    h = jax.nn.relu(adj @ (h @ w2) + b2)
    agent = jnp.argmax(x[:, 1] == 1.0)
    return h[agent] @ w3 + b3


def init_params(key, input_dim=4, hidden_dim=32):
    k1, k2, k3 = jax.random.split(key, 3)
    w1 = jax.random.normal(k1, (input_dim, hidden_dim), jnp.float32) * 0.1
    b1 = jnp.zeros((hidden_dim,), jnp.float32)
    w2 = jax.random.normal(k2, (hidden_dim, hidden_dim), jnp.float32) * 0.1
    b2 = jnp.zeros((hidden_dim,), jnp.float32)
    w3 = jax.random.normal(k3, (hidden_dim, OUT_DIM), jnp.float32) * 0.1
    b3 = jnp.zeros((OUT_DIM,), jnp.float32)
    return (w1, b1, w2, b2, w3, b3)


def make_edge_index(n, chord_offset):
    """Undirected ring + undirected chords (i, i+chord_offset). Shape (2, 4n)."""
    src = jnp.arange(n, dtype=jnp.int32)
    ring = (src + 1) % n
    chord = (src + chord_offset) % n
    s = jnp.concatenate([src, ring, src, chord])
    d = jnp.concatenate([ring, src, chord, src])
    return jnp.stack([s, d], axis=0)


if __name__ == "__main__":
    key = jax.random.PRNGKey(0)
    k_feat, k_param = jax.random.split(key)

    B, N, F_IN, HIDDEN = 16, 16, 4, 32        # 2 super-blocks of 8 graphs -> S=128

    # Node features for B graphs; mark node (3 + b) % N as the agent in graph b.
    x = jax.random.normal(k_feat, (B, N, F_IN), jnp.float32)
    x = x.at[:, :, 1].set(0.0)
    for b in range(B):
        x = x.at[b, (3 + b) % N, 1].set(1.0)

    # Per-graph topologies: ring + graph-dependent chords, shape (B, 2, 4N).
    edge_index = jnp.stack(
        [make_edge_index(N, 2 + (b % (N - 3))) for b in range(B)], axis=0)

    params = init_params(k_param, F_IN, HIDDEN)

    batch_fn = jax.jit(gnn_solver_policy_batch)
    logits = batch_fn(x, edge_index, params)                     # (B, 4)
    jax.block_until_ready(logits)
    assert logits.shape == (B, OUT_DIM)

    # f32 reference check (kernel uses bf16 MXU operands -> loose tolerance).
    ref = jax.vmap(lambda xb, eb: reference_forward(xb, eb, params))(x, edge_index)
    assert jnp.allclose(logits, ref, atol=1e-2, rtol=2e-2), (
        "mismatch vs f32 reference")

    # Single-graph path (pads the batch up to one super-block internally).
    logits0 = gnn_solver_policy(x[0], edge_index[0], params)     # (4,)
    jax.block_until_ready(logits0)
    assert logits0.shape == (OUT_DIM,)
    assert jnp.allclose(logits0, logits[0], atol=1e-3, rtol=1e-3)

    print("KERNEL_OK")
</pallas_src>

<mosaic_0001>
module attributes {stable_mosaic.version = 11 : i64} {
  func.func private @main(%arg0: i32) attributes {dimension_semantics = [#tpu.dimension_semantics<core_parallel>], iteration_bounds = array<i64: 2>, tpu.core_type = #tpu.core_type<sc_scalar_subcore>, window_params = []} {
    return
  }
}

module attributes {stable_mosaic.version = 11 : i64} {
  func.func private @main(%arg0: i32) attributes {dimension_semantics = [#tpu.dimension_semantics<core_parallel>], iteration_bounds = array<i64: 2>, tpu.core_type = #tpu.core_type<sc_scalar_subcore>, window_params = []} {
    return
  }
}

module attributes {stable_mosaic.version = 11 : i64} {
  func.func @gnn_policy_kernel(%arg0: i32, %arg1: memref<1x128x128xbf16, #tpu.memory_space<vmem>>, %arg2: memref<1x128x4xbf16, #tpu.memory_space<vmem>>, %arg3: memref<1x8x128xbf16, #tpu.memory_space<vmem>>, %arg4: memref<4x32xbf16, #tpu.memory_space<vmem>>, %arg5: memref<1x32xf32, #tpu.memory_space<vmem>>, %arg6: memref<32x32xbf16, #tpu.memory_space<vmem>>, %arg7: memref<1x32xf32, #tpu.memory_space<vmem>>, %arg8: memref<32x128xbf16, #tpu.memory_space<vmem>>, %arg9: memref<1x128xf32, #tpu.memory_space<vmem>>, %arg10: memref<8x128xf32, #tpu.memory_space<vmem>>) attributes {dimension_semantics = [#tpu.dimension_semantics<parallel>], iteration_bounds = array<i64: 2>, scalar_prefetch = 0 : i64, scratch_operands = 0 : i64, tpu.core_type = #tpu.core_type<tc>, window_params = [{transform_indices = @transform_0, window_bounds = array<i64: 1, 128, 128>}, {transform_indices = @transform_1, window_bounds = array<i64: 1, 128, 4>}, {transform_indices = @transform_2, window_bounds = array<i64: 1, 8, 128>}, {pipeline_mode = #tpu.pipeline_mode<synchronous>, transform_indices = @transform_3, window_bounds = array<i64: 4, 32>}, {pipeline_mode = #tpu.pipeline_mode<synchronous>, transform_indices = @transform_4, window_bounds = array<i64: 1, 32>}, {pipeline_mode = #tpu.pipeline_mode<synchronous>, transform_indices = @transform_5, window_bounds = array<i64: 32, 32>}, {pipeline_mode = #tpu.pipeline_mode<synchronous>, transform_indices = @transform_6, window_bounds = array<i64: 1, 32>}, {pipeline_mode = #tpu.pipeline_mode<synchronous>, transform_indices = @transform_7, window_bounds = array<i64: 32, 128>}, {pipeline_mode = #tpu.pipeline_mode<synchronous>, transform_indices = @transform_8, window_bounds = array<i64: 1, 128>}, {transform_indices = @transform_9, window_bounds = array<i64: 8, 128>}]} {
    %c0 = arith.constant 0 : index
    %c0_0 = arith.constant 0 : index
    %c0_1 = arith.constant 0 : index
    %0 = vector.load %arg2[%c0, %c0_0, %c0_1] : memref<1x128x4xbf16, #tpu.memory_space<vmem>>, vector<1x128x4xbf16>
    %1 = vector.shape_cast %0 : vector<1x128x4xbf16> to vector<128x4xbf16>
    %c0_2 = arith.constant 0 : index
    %c0_3 = arith.constant 0 : index
    %2 = vector.load %arg4[%c0_2, %c0_3] : memref<4x32xbf16, #tpu.memory_space<vmem>>, vector<4x32xbf16>
    %cst = arith.constant dense<0.000000e+00> : vector<128x32xf32>
    %3 = tpu.matmul %1, %2, %cst {dimension_numbers = #tpu.dot_dimension_numbers<[1], [0], [0], [1], [0, 0, 1, 1], [], []>} : vector<128x4xbf16>, vector<4x32xbf16>, vector<128x32xf32> -> vector<128x32xf32>
    %c0_4 = arith.constant 0 : index
    %c0_5 = arith.constant 0 : index
    %c0_6 = arith.constant 0 : index
    %4 = vector.load %arg1[%c0_4, %c0_5, %c0_6] : memref<1x128x128xbf16, #tpu.memory_space<vmem>>, vector<1x128x128xbf16>
    %5 = vector.shape_cast %4 : vector<1x128x128xbf16> to vector<128x128xbf16>
    %6 = arith.truncf %3 : vector<128x32xf32> to vector<128x32xbf16>
    %cst_7 = arith.constant dense<0.000000e+00> : vector<128x32xf32>
    %7 = tpu.matmul %5, %6, %cst_7 {dimension_numbers = #tpu.dot_dimension_numbers<[1], [0], [0], [1], [0, 0, 1, 1], [], []>} : vector<128x128xbf16>, vector<128x32xbf16>, vector<128x32xf32> -> vector<128x32xf32>
    %c0_8 = arith.constant 0 : index
    %c0_9 = arith.constant 0 : index
    %8 = vector.load %arg5[%c0_8, %c0_9] : memref<1x32xf32, #tpu.memory_space<vmem>>, vector<1x32xf32>
    %9 = vector.broadcast %8 : vector<1x32xf32> to vector<128x32xf32>
    %10 = arith.addf %7, %9 : vector<128x32xf32>
    %cst_10 = arith.constant 0.000000e+00 : f32
    %11 = vector.broadcast %cst_10 : f32 to vector<128x32xf32>
    %12 = arith.maximumf %10, %11 : vector<128x32xf32>
    %c0_11 = arith.constant 0 : index
    %c0_12 = arith.constant 0 : index
    %c0_13 = arith.constant 0 : index
    %13 = vector.load %arg3[%c0_11, %c0_12, %c0_13] : memref<1x8x128xbf16, #tpu.memory_space<vmem>>, vector<1x8x128xbf16>
    %14 = vector.shape_cast %13 : vector<1x8x128xbf16> to vector<8x128xbf16>
    %15 = arith.truncf %12 : vector<128x32xf32> to vector<128x32xbf16>
    %cst_14 = arith.constant dense<0.000000e+00> : vector<8x32xf32>
    %16 = tpu.matmul %14, %15, %cst_14 {dimension_numbers = #tpu.dot_dimension_numbers<[1], [0], [0], [1], [0, 0, 1, 1], [], []>} : vector<8x128xbf16>, vector<128x32xbf16>, vector<8x32xf32> -> vector<8x32xf32>
    %17 = arith.truncf %16 : vector<8x32xf32> to vector<8x32xbf16>
    %c0_15 = arith.constant 0 : index
    %c0_16 = arith.constant 0 : index
    %18 = vector.load %arg6[%c0_15, %c0_16] : memref<32x32xbf16, #tpu.memory_space<vmem>>, vector<32x32xbf16>
    %cst_17 = arith.constant dense<0.000000e+00> : vector<8x32xf32>
    %19 = tpu.matmul %17, %18, %cst_17 {dimension_numbers = #tpu.dot_dimension_numbers<[1], [0], [0], [1], [0, 0, 1, 1], [], []>} : vector<8x32xbf16>, vector<32x32xbf16>, vector<8x32xf32> -> vector<8x32xf32>
    %c0_18 = arith.constant 0 : index
    %c0_19 = arith.constant 0 : index
    %20 = vector.load %arg7[%c0_18, %c0_19] : memref<1x32xf32, #tpu.memory_space<vmem>>, vector<1x32xf32>
    %21 = vector.broadcast %20 : vector<1x32xf32> to vector<8x32xf32>
    %22 = arith.addf %19, %21 : vector<8x32xf32>
    %cst_20 = arith.constant 0.000000e+00 : f32
    %23 = vector.broadcast %cst_20 : f32 to vector<8x32xf32>
    %24 = arith.maximumf %22, %23 : vector<8x32xf32>
    %25 = arith.truncf %24 : vector<8x32xf32> to vector<8x32xbf16>
    %c0_21 = arith.constant 0 : index
    %c0_22 = arith.constant 0 : index
    %26 = vector.load %arg8[%c0_21, %c0_22] : memref<32x128xbf16, #tpu.memory_space<vmem>>, vector<32x128xbf16>
    %cst_23 = arith.constant dense<0.000000e+00> : vector<8x128xf32>
    %27 = tpu.matmul %25, %26, %cst_23 {dimension_numbers = #tpu.dot_dimension_numbers<[1], [0], [0], [1], [0, 0, 1, 1], [], []>} : vector<8x32xbf16>, vector<32x128xbf16>, vector<8x128xf32> -> vector<8x128xf32>
    %c0_24 = arith.constant 0 : index
    %c0_25 = arith.constant 0 : index
    %28 = vector.load %arg9[%c0_24, %c0_25] : memref<1x128xf32, #tpu.memory_space<vmem>>, vector<1x128xf32>
    %29 = vector.broadcast %28 : vector<1x128xf32> to vector<8x128xf32>
    %30 = arith.addf %27, %29 : vector<8x128xf32>
    %c0_26 = arith.constant 0 : index
    %c0_27 = arith.constant 0 : index
    %31 = vector.load %arg10[%c0_26, %c0_27] : memref<8x128xf32, #tpu.memory_space<vmem>>, vector<8x128xf32>
    tpu.vector_store %arg10[%c0_26, %c0_27], %30 {strides = array<i32>} : memref<8x128xf32, #tpu.memory_space<vmem>>, vector<8x128xf32>,
    return
  }
  func.func @transform_0(%arg0: i32) -> (i32, i32, i32) {
    %c0_i32 = arith.constant 0 : i32
    %c0_i32_0 = arith.constant 0 : i32
    %c0_i32_1 = arith.constant 0 : i32
    return %arg0, %c0_i32, %c0_i32_0 : i32, i32, i32
  }
  func.func @transform_1(%arg0: i32) -> (i32, i32, i32) {
    %c0_i32 = arith.constant 0 : i32
    %c0_i32_0 = arith.constant 0 : i32
    %c0_i32_1 = arith.constant 0 : i32
    return %arg0, %c0_i32, %c0_i32_0 : i32, i32, i32
  }
  func.func @transform_2(%arg0: i32) -> (i32, i32, i32) {
    %c0_i32 = arith.constant 0 : i32
    %c0_i32_0 = arith.constant 0 : i32
    %c0_i32_1 = arith.constant 0 : i32
    return %arg0, %c0_i32, %c0_i32_0 : i32, i32, i32
  }
  func.func @transform_3(%arg0: i32) -> (i32, i32) {
    %c0_i32 = arith.constant 0 : i32
    %c0_i32_0 = arith.constant 0 : i32
    %c0_i32_1 = arith.constant 0 : i32
    return %c0_i32, %c0_i32_0 : i32, i32
  }
  func.func @transform_4(%arg0: i32) -> (i32, i32) {
    %c0_i32 = arith.constant 0 : i32
    %c0_i32_0 = arith.constant 0 : i32
    %c0_i32_1 = arith.constant 0 : i32
    return %c0_i32, %c0_i32_0 : i32, i32
  }
  func.func @transform_5(%arg0: i32) -> (i32, i32) {
    %c0_i32 = arith.constant 0 : i32
    %c0_i32_0 = arith.constant 0 : i32
    %c0_i32_1 = arith.constant 0 : i32
    return %c0_i32, %c0_i32_0 : i32, i32
  }
  func.func @transform_6(%arg0: i32) -> (i32, i32) {
    %c0_i32 = arith.constant 0 : i32
    %c0_i32_0 = arith.constant 0 : i32
    %c0_i32_1 = arith.constant 0 : i32
    return %c0_i32, %c0_i32_0 : i32, i32
  }
  func.func @transform_7(%arg0: i32) -> (i32, i32) {
    %c0_i32 = arith.constant 0 : i32
    %c0_i32_0 = arith.constant 0 : i32
    %c0_i32_1 = arith.constant 0 : i32
    return %c0_i32, %c0_i32_0 : i32, i32
  }
  func.func @transform_8(%arg0: i32) -> (i32, i32) {
    %c0_i32 = arith.constant 0 : i32
    %c0_i32_0 = arith.constant 0 : i32
    %c0_i32_1 = arith.constant 0 : i32
    return %c0_i32, %c0_i32_0 : i32, i32
  }
  func.func @transform_9(%arg0: i32) -> (i32, i32) {
    %c0_i32 = arith.constant 0 : i32
    %c0_i32_0 = arith.constant 0 : i32
    return %arg0, %c0_i32 : i32, i32
  }
}

</mosaic_0001>

<llo_original>
// kernel: gnn_solver_policy_batch.1
$region0: #{gnn_solver_policy_batch.1}
  #allocation0 [shape = 'u32[]', space=smem, size = 0x4, offset = 0x4, fixed_abs, tag = 'smem constant byte address 0x4 - core index']
  #allocation1 [shape = 'u32[144,128]{1,0:T(1,128)}', space=vmem, size = 0x12000, scoped, tag = 'internal scratch']
  %s0 = inlined_call_operand.vmem [shape: bf16[2,128,128], index: 0, kind: input, shape index: {}]
  %s1 = inlined_call_operand.vmem [shape: bf16[2,128,4], index: 1, kind: input, shape index: {}]
  %s2 = inlined_call_operand.vmem [shape: bf16[2,8,128], index: 2, kind: input, shape index: {}]
  %s3 = inlined_call_operand.vmem [shape: bf16[4,32], index: 3, kind: input, shape index: {}]
  %s4 = inlined_call_operand.vmem [shape: f32[1,32], index: 4, kind: input, shape index: {}]
  %s5 = inlined_call_operand.vmem [shape: bf16[32,32], index: 5, kind: input, shape index: {}]
  %s6 = inlined_call_operand.vmem [shape: f32[1,32], index: 6, kind: input, shape index: {}]
  %s7 = inlined_call_operand.vmem [shape: bf16[32,128], index: 7, kind: input, shape index: {}]
  %s8 = inlined_call_operand.vmem [shape: f32[1,128], index: 8, kind: input, shape index: {}]
  %s9 = inlined_call_operand.vmem [shape: f32[16,128], index: 9, kind: output, shape index: {}]
  %s10 = sld [smem:[#allocation0]]
  $region69: #{gnn_solver_policy_batch.1} parent=0
    _
  %s12 = ssub.s32 1, %s10
  %s13 = scalar_select 0, %s12, %s10
  loop: start=0, step=1, limit=4
  $region2: #{gnn_solver_policy_batch.1} parent=0 // loop_pre_header
    _
  $region3: #{gnn_solver_policy_batch.1} parent=0 // loop_header
    %s15 = sphi 0, %s19
    %p16 = scmp.ge.s32.totalorder %s15, 4
    %s25 = sphi 0, %s27
    %s28 = sphi 0, %s25
    %s29 = sphi 0, %s28
    %s45 = sphi 0, %s29
    %s51 = sphi 0, %s53
    %s54 = sphi 0, %s51
    %s55 = sphi 0, %s54
    %s71 = sphi 0, %s55
    %s77 = sphi 0, %s79
    %s80 = sphi 0, %s77
    %s81 = sphi 0, %s80
    %s97 = sphi 0, %s81
    %s101 = sphi 0, %s101
    %s103 = sphi 0, %s101
    %s104 = sphi 0, %s103
    %s118 = sphi 0, %s104
    %s122 = sphi 0, %s122
    %s124 = sphi 0, %s122
    %s125 = sphi 0, %s124
    %s139 = sphi 0, %s125
    %s143 = sphi 0, %s143
    %s145 = sphi 0, %s143
    %s146 = sphi 0, %s145
    %s160 = sphi 0, %s146
    %s164 = sphi 0, %s164
    %s166 = sphi 0, %s164
    %s167 = sphi 0, %s166
    %s181 = sphi 0, %s167
    %s185 = sphi 0, %s185
    %s187 = sphi 0, %s185
    %s188 = sphi 0, %s187
    %s202 = sphi 0, %s188
    %s206 = sphi 0, %s206
    %s208 = sphi 0, %s206
    %s209 = sphi 0, %s208
    %s223 = sphi 0, %s209
    %s229 = sphi 0, %s231
    %s232 = sphi 0, %s229
    %s233 = sphi 0, %s232
    %s249 = sphi 0, %s233
  $region4: #{gnn_solver_policy_batch.1} parent=0 // loop_header_branch
    %18 = sbr.rel (%p16) target = $region8
  $region5: #{gnn_solver_policy_batch.1} parent=0 // loop_body
    %s20 = ssub.s32 %s15, 1
    %s21 = ssub.s32 %s15, 2
    %s22 = sadd.s32 %s15, 1
    %s23 = ssub.s32 %s15, %s22
    %p24 = scmp.eq.s32.totalorder %s23, 0
    %s26 = sadd.s32 %s25, 1
    %s27 = scalar_select %p24, %s25, %s26
    %p30 = pneg %p24
    %p31 = scmp.eq.s32.totalorder %s15, 1
    %p32 = por %p30, %p31
    %p33 = scmp.ne.s32.totalorder %s25, %s28
    %p34 = scmp.eq.s32.totalorder %s15, 0
    %p35 = por %p33, %p34
    %p36 = scmp.ne.s32.totalorder %s25, %s28
    %p37 = scmp.eq.s32.totalorder %s20, 1
    %p38 = por %p36, %p37
    %p39 = scmp.ne.s32.totalorder %s28, %s29
    %p40 = scmp.eq.s32.totalorder %s20, 0
    %p41 = por %p39, %p40
    %p42 = scmp.ne.s32.totalorder %s28, %s29
    %p43 = scmp.eq.s32.totalorder %s21, 1
    %p44 = por %p42, %p43
    %p46 = scmp.ne.s32.totalorder %s29, %s45
    %p47 = scmp.eq.s32.totalorder %s21, 0
    %p48 = por %p46, %p47
    %s49 = ssub.s32 %s15, %s22
    %p50 = scmp.eq.s32.totalorder %s49, 0
    %s52 = sadd.s32 %s51, 1
    %s53 = scalar_select %p50, %s51, %s52
    %p56 = pneg %p50
    %p57 = scmp.eq.s32.totalorder %s15, 1
    %p58 = por %p56, %p57
    %p59 = scmp.ne.s32.totalorder %s51, %s54
    %p60 = scmp.eq.s32.totalorder %s15, 0
    %p61 = por %p59, %p60
    %p62 = scmp.ne.s32.totalorder %s51, %s54
    %p63 = scmp.eq.s32.totalorder %s20, 1
    %p64 = por %p62, %p63
    %p65 = scmp.ne.s32.totalorder %s54, %s55
    %p66 = scmp.eq.s32.totalorder %s20, 0
    %p67 = por %p65, %p66
    %p68 = scmp.ne.s32.totalorder %s54, %s55
    %p69 = scmp.eq.s32.totalorder %s21, 1
    %p70 = por %p68, %p69
    %p72 = scmp.ne.s32.totalorder %s55, %s71
    %p73 = scmp.eq.s32.totalorder %s21, 0
    %p74 = por %p72, %p73
    %s75 = ssub.s32 %s15, %s22
    %p76 = scmp.eq.s32.totalorder %s75, 0
    %s78 = sadd.s32 %s77, 1
    %s79 = scalar_select %p76, %s77, %s78
    %p82 = pneg %p76
    %p83 = scmp.eq.s32.totalorder %s15, 1
    %p84 = por %p82, %p83
    %p85 = scmp.ne.s32.totalorder %s77, %s80
    %p86 = scmp.eq.s32.totalorder %s15, 0
    %p87 = por %p85, %p86
    %p88 = scmp.ne.s32.totalorder %s77, %s80
    %p89 = scmp.eq.s32.totalorder %s20, 1
    %p90 = por %p88, %p89
    %p91 = scmp.ne.s32.totalorder %s80, %s81
    %p92 = scmp.eq.s32.totalorder %s20, 0
    %p93 = por %p91, %p92
    %p94 = scmp.ne.s32.totalorder %s80, %s81
    %p95 = scmp.eq.s32.totalorder %s21, 1
    %p96 = por %p94, %p95
    %p98 = scmp.ne.s32.totalorder %s81, %s97
    %p99 = scmp.eq.s32.totalorder %s21, 0
    %p100 = por %p98, %p99
    %s102 = sadd.s32 %s101, 1
    %p105 = scmp.eq.s32.totalorder %s15, 1
    %p106 = scmp.ne.s32.totalorder %s101, %s103
    %p107 = scmp.eq.s32.totalorder %s15, 0
    %p108 = por %p106, %p107
    %p109 = scmp.ne.s32.totalorder %s101, %s103
    %p110 = scmp.eq.s32.totalorder %s20, 1
    %p111 = por %p109, %p110
    %p112 = scmp.ne.s32.totalorder %s103, %s104
    %p113 = scmp.eq.s32.totalorder %s20, 0
    %p114 = por %p112, %p113
    %p115 = scmp.ne.s32.totalorder %s103, %s104
    %p116 = scmp.eq.s32.totalorder %s21, 1
    %p117 = por %p115, %p116
    %p119 = scmp.ne.s32.totalorder %s104, %s118
    %p120 = scmp.eq.s32.totalorder %s21, 0
    %p121 = por %p119, %p120
    %s123 = sadd.s32 %s122, 1
    %p126 = scmp.eq.s32.totalorder %s15, 1
    %p127 = scmp.ne.s32.totalorder %s122, %s124
    %p128 = scmp.eq.s32.totalorder %s15, 0
    %p129 = por %p127, %p128
    %p130 = scmp.ne.s32.totalorder %s122, %s124
    %p131 = scmp.eq.s32.totalorder %s20, 1
    %p132 = por %p130, %p131
    %p133 = scmp.ne.s32.totalorder %s124, %s125
    %p134 = scmp.eq.s32.totalorder %s20, 0
    %p135 = por %p133, %p134
    %p136 = scmp.ne.s32.totalorder %s124, %s125
    %p137 = scmp.eq.s32.totalorder %s21, 1
    %p138 = por %p136, %p137
    %p140 = scmp.ne.s32.totalorder %s125, %s139
    %p141 = scmp.eq.s32.totalorder %s21, 0
    %p142 = por %p140, %p141
    %s144 = sadd.s32 %s143, 1
    %p147 = scmp.eq.s32.totalorder %s15, 1
    %p148 = scmp.ne.s32.totalorder %s143, %s145
    %p149 = scmp.eq.s32.totalorder %s15, 0
    %p150 = por %p148, %p149
    %p151 = scmp.ne.s32.totalorder %s143, %s145
    %p152 = scmp.eq.s32.totalorder %s20, 1
    %p153 = por %p151, %p152
    %p154 = scmp.ne.s32.totalorder %s145, %s146
    %p155 = scmp.eq.s32.totalorder %s20, 0
    %p156 = por %p154, %p155
    %p157 = scmp.ne.s32.totalorder %s145, %s146
    %p158 = scmp.eq.s32.totalorder %s21, 1
    %p159 = por %p157, %p158
    %p161 = scmp.ne.s32.totalorder %s146, %s160
    %p162 = scmp.eq.s32.totalorder %s21, 0
    %p163 = por %p161, %p162
    %s165 = sadd.s32 %s164, 1
    %p168 = scmp.eq.s32.totalorder %s15, 1
    %p169 = scmp.ne.s32.totalorder %s164, %s166
    %p170 = scmp.eq.s32.totalorder %s15, 0
    %p171 = por %p169, %p170
    %p172 = scmp.ne.s32.totalorder %s164, %s166
    %p173 = scmp.eq.s32.totalorder %s20, 1
    %p174 = por %p172, %p173
    %p175 = scmp.ne.s32.totalorder %s166, %s167
    %p176 = scmp.eq.s32.totalorder %s20, 0
    %p177 = por %p175, %p176
    %p178 = scmp.ne.s32.totalorder %s166, %s167
    %p179 = scmp.eq.s32.totalorder %s21, 1
    %p180 = por %p178, %p179
    %p182 = scmp.ne.s32.totalorder %s167, %s181
    %p183 = scmp.eq.s32.totalorder %s21, 0
    %p184 = por %p182, %p183
    %s186 = sadd.s32 %s185, 1
    %p189 = scmp.eq.s32.totalorder %s15, 1
    %p190 = scmp.ne.s32.totalorder %s185, %s187
    %p191 = scmp.eq.s32.totalorder %s15, 0
    %p192 = por %p190, %p191
    %p193 = scmp.ne.s32.totalorder %s185, %s187
    %p194 = scmp.eq.s32.totalorder %s20, 1
    %p195 = por %p193, %p194
    %p196 = scmp.ne.s32.totalorder %s187, %s188
    %p197 = scmp.eq.s32.totalorder %s20, 0
    %p198 = por %p196, %p197
    %p199 = scmp.ne.s32.totalorder %s187, %s188
    %p200 = scmp.eq.s32.totalorder %s21, 1
    %p201 = por %p199, %p200
    %p203 = scmp.ne.s32.totalorder %s188, %s202
    %p204 = scmp.eq.s32.totalorder %s21, 0
    %p205 = por %p203, %p204
    %s207 = sadd.s32 %s206, 1
    %p210 = scmp.eq.s32.totalorder %s15, 1
    %p211 = scmp.ne.s32.totalorder %s206, %s208
    %p212 = scmp.eq.s32.totalorder %s15, 0
    %p213 = por %p211, %p212
    %p214 = scmp.ne.s32.totalorder %s206, %s208
    %p215 = scmp.eq.s32.totalorder %s20, 1
    %p216 = por %p214, %p215
    %p217 = scmp.ne.s32.totalorder %s208, %s209
    %p218 = scmp.eq.s32.totalorder %s20, 0
    %p219 = por %p217, %p218
    %p220 = scmp.ne.s32.totalorder %s208, %s209
    %p221 = scmp.eq.s32.totalorder %s21, 1
    %p222 = por %p220, %p221
    %p224 = scmp.ne.s32.totalorder %s209, %s223
    %p225 = scmp.eq.s32.totalorder %s21, 0
    %p226 = por %p224, %p225
    %s227 = ssub.s32 %s15, %s22
    %p228 = scmp.eq.s32.totalorder %s227, 0
    %s230 = sadd.s32 %s229, 1
    %s231 = scalar_select %p228, %s229, %s230
    %p234 = pneg %p228
    %p235 = scmp.eq.s32.totalorder %s15, 1
    %p236 = por %p234, %p235
    %p237 = scmp.ne.s32.totalorder %s229, %s232
    %p238 = scmp.eq.s32.totalorder %s15, 0
    %p239 = por %p237, %p238
    %p240 = scmp.ne.s32.totalorder %s229, %s232
    %p241 = scmp.eq.s32.totalorder %s20, 1
    %p242 = por %p240, %p241
    %p243 = scmp.ne.s32.totalorder %s232, %s233
    %p244 = scmp.eq.s32.totalorder %s20, 0
    %p245 = por %p243, %p244
    %p246 = scmp.ne.s32.totalorder %s232, %s233
    %p247 = scmp.eq.s32.totalorder %s21, 1
    %p248 = por %p246, %p247
    %p250 = scmp.ne.s32.totalorder %s233, %s249
    %p251 = scmp.eq.s32.totalorder %s21, 0
    %p252 = por %p250, %p251
    %p253 = scmp.le.s32.totalorder 1, %s15
    %p254 = scmp.lt.s32.totalorder %s15, 3
    %p255 = pnand %p253, %p254
    %p256 = pneg %p255
    // Predicated region
    $region9: #{gnn_solver_policy_batch.1} parent=5 // pred_check
      _
    $region10: #{gnn_solver_policy_batch.1} parent=5 // pred_check_branch
      %258 = sbr.rel (%p255) target = $region12
    $region11: #{gnn_solver_policy_batch.1} parent=5 // pred_region
      %s259 = ssub.s32 %s15, 1
      // Predicated region
      $region13: #{gnn_solver_policy_batch.1} parent=11 // pred_check
        %p260 = pneg %p114
      $region14: #{gnn_solver_policy_batch.1} parent=11 // pred_check_branch
        %262 = sbr.rel (%p260) target = $region16
      $region15: #{gnn_solver_policy_batch.1} parent=11 // pred_region
        _
      $region16: #{gnn_solver_policy_batch.1} parent=11 // pred_fallthru
        _
      // Predicated region
      $region17: #{gnn_solver_policy_batch.1} parent=11 // pred_check
        %p263 = pneg %p135
      $region18: #{gnn_solver_policy_batch.1} parent=11 // pred_check_branch
        %265 = sbr.rel (%p263) target = $region20
      $region19: #{gnn_solver_policy_batch.1} parent=11 // pred_region
        _
      $region20: #{gnn_solver_policy_batch.1} parent=11 // pred_fallthru
        _
      // Predicated region
      $region21: #{gnn_solver_policy_batch.1} parent=11 // pred_check
        %p266 = pneg %p156
      $region22: #{gnn_solver_policy_batch.1} parent=11 // pred_check_branch
        %268 = sbr.rel (%p266) target = $region24
      $region23: #{gnn_solver_policy_batch.1} parent=11 // pred_region
        _
      $region24: #{gnn_solver_policy_batch.1} parent=11 // pred_fallthru
        _
      // Predicated region
      $region25: #{gnn_solver_policy_batch.1} parent=11 // pred_check
        %p269 = pneg %p177
      $region26: #{gnn_solver_policy_batch.1} parent=11 // pred_check_branch
        %271 = sbr.rel (%p269) target = $region28
      $region27: #{gnn_solver_policy_batch.1} parent=11 // pred_region
        _
      $region28: #{gnn_solver_policy_batch.1} parent=11 // pred_fallthru
        _
      // Predicated region
      $region29: #{gnn_solver_policy_batch.1} parent=11 // pred_check
        %p272 = pneg %p198
      $region30: #{gnn_solver_policy_batch.1} parent=11 // pred_check_branch
        %274 = sbr.rel (%p272) target = $region32
      $region31: #{gnn_solver_policy_batch.1} parent=11 // pred_region
        _
      $region32: #{gnn_solver_policy_batch.1} parent=11 // pred_fallthru
        _
      // Predicated region
      $region33: #{gnn_solver_policy_batch.1} parent=11 // pred_check
        %p275 = pneg %p219
      $region34: #{gnn_solver_policy_batch.1} parent=11 // pred_check_branch
        %277 = sbr.rel (%p275) target = $region36
      $region35: #{gnn_solver_policy_batch.1} parent=11 // pred_region
        _
      $region36: #{gnn_solver_policy_batch.1} parent=11 // pred_fallthru
        _
    $region12: #{gnn_solver_policy_batch.1} parent=5 // pred_fallthru
      _
    %p278 = scmp.lt.s32.totalorder %s15, 2
    // Predicated region
    $region37: #{gnn_solver_policy_batch.1} parent=5 // pred_check
      %p279 = pneg %p278
    $region38: #{gnn_solver_policy_batch.1} parent=5 // pred_check_branch
      %281 = sbr.rel (%p279) target = $region40
    $region39: #{gnn_solver_policy_batch.1} parent=5 // pred_region
      // Predicated region
      $region41: #{gnn_solver_policy_batch.1} parent=39 // pred_check
        %p282 = pneg %p35
      $region42: #{gnn_solver_policy_batch.1} parent=39 // pred_check_branch
        %284 = sbr.rel (%p282) target = $region44
      $region43: #{gnn_solver_policy_batch.1} parent=39 // pred_region
        %p285 = scmp.lt.s32.totalorder %s15, 1
        %s286 = scalar_select %p285, %s15, 1
        %s287 = smul.addr %s286, 16
        %s288 = smul.addr %s287, 4
        %s289 = scalar_lea.vmem %s0, %s288
      $region44: #{gnn_solver_policy_batch.1} parent=39 // pred_fallthru
        _
      // Predicated region
      $region45: #{gnn_solver_policy_batch.1} parent=39 // pred_check
        %p290 = pneg %p61
      $region46: #{gnn_solver_policy_batch.1} parent=39 // pred_check_branch
        %292 = sbr.rel (%p290) target = $region48
      $region47: #{gnn_solver_policy_batch.1} parent=39 // pred_region
        %p293 = scmp.lt.s32.totalorder %s15, 1
        %s294 = scalar_select %p293, %s15, 1
        %s295 = smul.addr %s294, 16
        %s296 = smul.addr %s295, 4
        %s297 = scalar_lea.vmem %s1, %s296
      $region48: #{gnn_solver_policy_batch.1} parent=39 // pred_fallthru
        _
      // Predicated region
      $region49: #{gnn_solver_policy_batch.1} parent=39 // pred_check
        %p298 = pneg %p87
      $region50: #{gnn_solver_policy_batch.1} parent=39 // pred_check_branch
        %300 = sbr.rel (%p298) target = $region52
      $region51: #{gnn_solver_policy_batch.1} parent=39 // pred_region
        %p301 = scmp.lt.s32.totalorder %s15, 1
        %s302 = scalar_select %p301, %s15, 1
        %s303 = smul.addr %s302, 4
        %s304 = scalar_lea.vmem %s2, %s303
      $region52: #{gnn_solver_policy_batch.1} parent=39 // pred_fallthru
        _
    $region40: #{gnn_solver_policy_batch.1} parent=5 // pred_fallthru
      _
    %p305 = scmp.le.s32.totalorder 1, %s15
    %p306 = scmp.lt.s32.totalorder %s15, 3
    %p307 = pnand %p305, %p306
    %p308 = pneg %p307
    // Predicated region
    $region53: #{gnn_solver_policy_batch.1} parent=5 // pred_check
      _
    $region54: #{gnn_solver_policy_batch.1} parent=5 // pred_check_branch
      %310 = sbr.rel (%p307) target = $region56
    $region55: #{gnn_solver_policy_batch.1} parent=5 // pred_region
      %s311 = ssub.s32 %s15, 1
      %p312 = scmp.lt.s32.totalorder %s20, 1
      %s313 = scalar_select %p312, %s20, 1
      %s314 = smul.addr %s313, 16
      %s315 = smul.addr %s314, 4
      %s316 = scalar_lea.vmem %s0, %s315
      %p317 = pneg %p41
      %p318 = pneg %p38
      %p319 = scmp.lt.s32.totalorder %s20, 1
      %s320 = scalar_select %p319, %s20, 1
      %s321 = smul.addr %s320, 16
      %s322 = smul.addr %s321, 4
      %s323 = scalar_lea.vmem %s1, %s322
      %p324 = pneg %p67
      %p325 = pneg %p64
      %p326 = scmp.lt.s32.totalorder %s20, 1
      %s327 = scalar_select %p326, %s20, 1
      %s328 = smul.addr %s327, 4
      %s329 = scalar_lea.vmem %s2, %s328
      %p330 = pneg %p93
      %p331 = pneg %p90
      %p332 = pneg %p114
      %p333 = pneg %p111
      %p334 = pneg %p135
      %p335 = pneg %p132
      %p336 = pneg %p156
      %p337 = pneg %p153
      %p338 = pneg %p177
      %p339 = pneg %p174
      %p340 = pneg %p198
      %p341 = pneg %p195
      %p342 = pneg %p219
      %p343 = pneg %p216
      %p344 = pneg %p245
      %p345 = pneg %p242
      %p346 = scmp.lt.s32.totalorder %s20, 1
      %s347 = scalar_select %p346, %s20, 1
      %s348 = smul.addr %s347, 8
      %s349 = scalar_lea.vmem %s9, %s348
      %p350 = scmp.lt.s32.totalorder %s20, 1
      %s351 = scalar_select %p350, %s20, 1
      %s352 = smul.addr %s351, 16
      %s353 = smul.addr %s352, 4
      %s354 = scalar_lea.vmem %s0, %s353
      %p355 = scmp.lt.s32.totalorder %s20, 1
      %s356 = scalar_select %p355, %s20, 1
      %s357 = smul.addr %s356, 16
      %s358 = smul.addr %s357, 4
      %s359 = scalar_lea.vmem %s1, %s358
      %p360 = scmp.lt.s32.totalorder %s20, 1
      %s361 = scalar_select %p360, %s20, 1
      %s362 = smul.addr %s361, 4
      %s363 = scalar_lea.vmem %s2, %s362
      %p364 = scmp.lt.s32.totalorder %s20, 1
      %s365 = scalar_select %p364, %s20, 1
      %s366 = smul.addr %s365, 8
      %s367 = scalar_lea.vmem %s9, %s366
      %v369 = vld [vmem:[%s359] sm:$0xf]
      %v370 = vld [vmem:[%s359 + $0x4] sm:$0xf]
      %v371 = vld [vmem:[%s359 + $0x8] sm:$0xf]
      %v372 = vld [vmem:[%s359 + $0xc] sm:$0xf]
      %v373 = vld [vmem:[%s359 + $0x10] sm:$0xf]
      %v374 = vld [vmem:[%s359 + $0x14] sm:$0xf]
      %v375 = vld [vmem:[%s359 + $0x18] sm:$0xf]
      %v376 = vld [vmem:[%s359 + $0x1c] sm:$0xf]
      %v377 = vld [vmem:[%s359 + $0x20] sm:$0xf]
      %v378 = vld [vmem:[%s359 + $0x24] sm:$0xf]
      %v379 = vld [vmem:[%s359 + $0x28] sm:$0xf]
      %v380 = vld [vmem:[%s359 + $0x2c] sm:$0xf]
      %v381 = vld [vmem:[%s359 + $0x30] sm:$0xf]
      %v382 = vld [vmem:[%s359 + $0x34] sm:$0xf]
      %v383 = vld [vmem:[%s359 + $0x38] sm:$0xf]
      %v384 = vld [vmem:[%s359 + $0x3c] sm:$0xf]
      %v385 = vld [vmem:[%s3] sm:$0x3]
      %v402 = vunpack.c.l.b16 %v369
      %v403 = vunpack.c.l.b16 %v370
      %v404 = vunpack.c.l.b16 %v371
      %v405 = vunpack.c.l.b16 %v372
      %v406 = vunpack.c.l.b16 %v373
      %v407 = vunpack.c.l.b16 %v374
      %v408 = vunpack.c.l.b16 %v375
      %v409 = vunpack.c.l.b16 %v376
      %v410 = vunpack.c.l.b16 %v377
      %v411 = vunpack.c.l.b16 %v378
      %v412 = vunpack.c.l.b16 %v379
      %v413 = vunpack.c.l.b16 %v380
      %v414 = vunpack.c.l.b16 %v381
      %v415 = vunpack.c.l.b16 %v382
      %v416 = vunpack.c.l.b16 %v383
      %v417 = vunpack.c.l.b16 %v384
      %v418 = vpack.c.b16 %v403, %v402
      %v419 = vpack.c.b16 %v405, %v404
      %v420 = vpack.c.b16 %v407, %v406
      %v421 = vpack.c.b16 %v409, %v408
      %v422 = vpack.c.b16 %v411, %v410
      %v423 = vpack.c.b16 %v413, %v412
      %v424 = vpack.c.b16 %v415, %v414
      %v425 = vpack.c.b16 %v417, %v416
      %vm426 = vcmask 31744
      %v428 = vsel %vm426, %v418, 0
      %v431 = vsel %vm426, %v419, 0
      %v434 = vsel %vm426, %v420, 0
      %v437 = vsel %vm426, %v421, 0
      %v440 = vsel %vm426, %v422, 0
      %v443 = vsel %vm426, %v423, 0
      %v446 = vsel %vm426, %v424, 0
      %v449 = vsel %vm426, %v425, 0
      %vm451 = vcmask 1041408
      %v453 = vsel %vm451, %v385, 0
      %455 = vmatprep.subr.bf16.mxu0 0
      %456 = vmatpush1.bf16.msra.mxu0 %v453
      %457 = vmatprep.subr.bf16.mxu0 0
      %458 = vmatpush1.bf16.msra.mxu0 0
      %459 = vmatprep.subr.bf16.mxu0 0
      %460 = vmatpush1.bf16.msra.mxu0 0
      %461 = vmatprep.subr.bf16.mxu0 0
      %462 = vmatpush1.bf16.msra.mxu0 0
      %463 = vmatprep.subr.bf16.mxu0 0
      %464 = vmatpush1.bf16.msra.mxu0 0
      %465 = vmatprep.subr.bf16.mxu0 0
      %466 = vmatpush1.bf16.msra.mxu0 0
      %467 = vmatprep.subr.bf16.mxu0 0
      %468 = vmatpush1.bf16.msra.mxu0 0
      %469 = vmatprep.subr.bf16.mxu0 0
      %470 = vmatpush1.bf16.msra.mxu0 0
      %471 = vmatprep.subr.bf16.mxu0 0
      %472 = vmatpush1.bf16.msra.mxu0 0
      %473 = vmatprep.subr.bf16.mxu0 0
      %474 = vmatpush1.bf16.msra.mxu0 0
      %475 = vmatprep.subr.bf16.mxu0 0
      %476 = vmatpush1.bf16.msra.mxu0 0
      %477 = vmatprep.subr.bf16.mxu0 0
      %478 = vmatpush1.bf16.msra.mxu0 0
      %479 = vmatprep.subr.bf16.mxu0 0
      %480 = vmatpush1.bf16.msra.mxu0 0
      %481 = vmatprep.subr.bf16.mxu0 0
      %482 = vmatpush1.bf16.msra.mxu0 0
      %483 = vmatprep.subr.bf16.mxu0 0
      %484 = vmatpush1.bf16.msra.mxu0 0
      %485 = vmatprep.subr.bf16.mxu0 0
      %486 = vmatpush1.bf16.msra.mxu0 0
      %487 = vmatprep.mubr.bf16.mxu0 0
      %488 = vmatmul.mubr.bf16.gmra.mrb[0].mxu0 %v428
      %v489 = vpop.f32.mrb[0].mxu0
      %v490 = vadd.f32 0.0, %v489
      %v491 = vpop.f32.mrb[0].mxu0
      %v492 = vpop.f32.mrb[0].mxu0
      %v493 = vadd.f32 0.0, %v492
      %v494 = vpop.f32.mrb[0].mxu0
      %495 = vmatprep.mubr.bf16.mxu0 0
      %496 = vmatmul.mubr.bf16.gmra.mrb[0].mxu0 %v431
      %v497 = vpop.f32.mrb[0].mxu0
      %v498 = vadd.f32 0.0, %v497
      %v499 = vpop.f32.mrb[0].mxu0
      %v500 = vpop.f32.mrb[0].mxu0
      %v501 = vadd.f32 0.0, %v500
      %v502 = vpop.f32.mrb[0].mxu0
      %503 = vmatprep.mubr.bf16.mxu0 0
      %504 = vmatmul.mubr.bf16.gmra.mrb[0].mxu0 %v434
      %v505 = vpop.f32.mrb[0].mxu0
      %v506 = vadd.f32 0.0, %v505
      %v507 = vpop.f32.mrb[0].mxu0
      %v508 = vpop.f32.mrb[0].mxu0
      %v509 = vadd.f32 0.0, %v508
      %v510 = vpop.f32.mrb[0].mxu0
      %511 = vmatprep.mubr.bf16.mxu0 0
      %512 = vmatmul.mubr.bf16.gmra.mrb[0].mxu0 %v437
      %v513 = vpop.f32.mrb[0].mxu0
      %v514 = vadd.f32 0.0, %v513
      %v515 = vpop.f32.mrb[0].mxu0
      %v516 = vpop.f32.mrb[0].mxu0
      %v517 = vadd.f32 0.0, %v516
      %v518 = vpop.f32.mrb[0].mxu0
      %519 = vmatprep.mubr.bf16.mxu0 0
      %520 = vmatmul.mubr.bf16.gmra.mrb[0].mxu0 %v440
      %v521 = vpop.f32.mrb[0].mxu0
      %v522 = vadd.f32 0.0, %v521
      %v523 = vpop.f32.mrb[0].mxu0
      %v524 = vpop.f32.mrb[0].mxu0
      %v525 = vadd.f32 0.0, %v524
      %v526 = vpop.f32.mrb[0].mxu0
      %527 = vmatprep.mubr.bf16.mxu0 0
      %528 = vmatmul.mubr.bf16.gmra.mrb[0].mxu0 %v443
      %v529 = vpop.f32.mrb[0].mxu0
      %v530 = vadd.f32 0.0, %v529
      %v531 = vpop.f32.mrb[0].mxu0
      %v532 = vpop.f32.mrb[0].mxu0
      %v533 = vadd.f32 0.0, %v532
      %v534 = vpop.f32.mrb[0].mxu0
      %535 = vmatprep.mubr.bf16.mxu0 0
      %536 = vmatmul.mubr.bf16.gmra.mrb[0].mxu0 %v446
      %v537 = vpop.f32.mrb[0].mxu0
      %v538 = vadd.f32 0.0, %v537
      %v539 = vpop.f32.mrb[0].mxu0
      %v540 = vpop.f32.mrb[0].mxu0
      %v541 = vadd.f32 0.0, %v540
      %v542 = vpop.f32.mrb[0].mxu0
      %543 = vmatprep.mubr.bf16.mxu0 0
      %544 = vmatmul.mubr.bf16.gmra.mrb[0].mxu0 %v449
      %v545 = vpop.f32.mrb[0].mxu0
      %v546 = vadd.f32 0.0, %v545
      %v547 = vpop.f32.mrb[0].mxu0
      %v548 = vpop.f32.mrb[0].mxu0
      %v549 = vadd.f32 0.0, %v548
      %v550 = vpop.f32.mrb[0].mxu0
      %551 = vdwg.mxu0
      %v552 = vld [vmem:[%s354] sm:$0xf]
      %v553 = vld [vmem:[%s354 + $0x4] sm:$0xf]
      %v554 = vld [vmem:[%s354 + $0x8] sm:$0xf]
      %v555 = vld [vmem:[%s354 + $0xc] sm:$0xf]
      %v556 = vld [vmem:[%s354 + $0x10] sm:$0xf]
      %v557 = vld [vmem:[%s354 + $0x14] sm:$0xf]
      %v558 = vld [vmem:[%s354 + $0x18] sm:$0xf]
      %v559 = vld [vmem:[%s354 + $0x1c] sm:$0xf]
      %v560 = vld [vmem:[%s354 + $0x20] sm:$0xf]
      %v561 = vld [vmem:[%s354 + $0x24] sm:$0xf]
      %v562 = vld [vmem:[%s354 + $0x28] sm:$0xf]
      %v563 = vld [vmem:[%s354 + $0x2c] sm:$0xf]
      %v564 = vld [vmem:[%s354 + $0x30] sm:$0xf]
      %v565 = vld [vmem:[%s354 + $0x34] sm:$0xf]
      %v566 = vld [vmem:[%s354 + $0x38] sm:$0xf]
      %v567 = vld [vmem:[%s354 + $0x3c] sm:$0xf]
      %v568 = vpack.c.bf16 %v493, %v490
      %v569 = vpack.c.bf16 %v501, %v498
      %v570 = vpack.c.bf16 %v509, %v506
      %v571 = vpack.c.bf16 %v517, %v514
      %v572 = vpack.c.bf16 %v525, %v522
      %v573 = vpack.c.bf16 %v533, %v530
      %v574 = vpack.c.bf16 %v541, %v538
      %v575 = vpack.c.bf16 %v549, %v546
      %v576 = vld [vmem:[%s4] sm:$0x1]
      %v578 = vlaneseq
      %v579 = vshrl.u32 %v578, 7
      %v580 = vsub.s32 0, %v579
      %v581 = vrot.slane %v576, %v580
      %v599 = vunpack.c.l.b16 %v552
      %v600 = vunpack.c.l.b16 %v553
      %v601 = vunpack.c.l.b16 %v554
      %v602 = vunpack.c.l.b16 %v555
      %v603 = vunpack.c.l.b16 %v556
      %v604 = vunpack.c.l.b16 %v557
      %v605 = vunpack.c.l.b16 %v558
      %v606 = vunpack.c.l.b16 %v559
      %v607 = vunpack.c.l.b16 %v560
      %v608 = vunpack.c.l.b16 %v561
      %v609 = vunpack.c.l.b16 %v562
      %v610 = vunpack.c.l.b16 %v563
      %v611 = vunpack.c.l.b16 %v564
      %v612 = vunpack.c.l.b16 %v565
      %v613 = vunpack.c.l.b16 %v566
      %v614 = vunpack.c.l.b16 %v567
      %v615 = vpack.c.b16 %v600, %v599
      %v616 = vpack.c.b16 %v602, %v601
      %v617 = vpack.c.b16 %v604, %v603
      %v618 = vpack.c.b16 %v606, %v605
      %v619 = vpack.c.b16 %v608, %v607
      %v620 = vpack.c.b16 %v610, %v609
      %v621 = vpack.c.b16 %v612, %v611
      %v622 = vpack.c.b16 %v614, %v613
      %631 = vmatprep.subr.bf16.mxu0 0
      %632 = vmatpush1.bf16.msra.mxu0 %v568
      %633 = vmatprep.subr.bf16.mxu0 0
      %634 = vmatpush1.bf16.msra.mxu0 %v569
      %635 = vmatprep.subr.bf16.mxu0 0
      %636 = vmatpush1.bf16.msra.mxu0 %v570
      %637 = vmatprep.subr.bf16.mxu0 0
      %638 = vmatpush1.bf16.msra.mxu0 %v571
      %639 = vmatprep.subr.bf16.mxu0 0
      %640 = vmatpush1.bf16.msra.mxu0 %v572
      %641 = vmatprep.subr.bf16.mxu0 0
      %642 = vmatpush1.bf16.msra.mxu0 %v573
      %643 = vmatprep.subr.bf16.mxu0 0
      %644 = vmatpush1.bf16.msra.mxu0 %v574
      %645 = vmatprep.subr.bf16.mxu0 0
      %646 = vmatpush1.bf16.msra.mxu0 %v575
      %647 = vmatprep.subr.bf16.mxu0 0
      %648 = vmatpush1.bf16.msra.mxu0 0
      %649 = vmatprep.subr.bf16.mxu0 0
      %650 = vmatpush1.bf16.msra.mxu0 0
      %651 = vmatprep.subr.bf16.mxu0 0
      %652 = vmatpush1.bf16.msra.mxu0 0
      %653 = vmatprep.subr.bf16.mxu0 0
      %654 = vmatpush1.bf16.msra.mxu0 0
      %655 = vmatprep.subr.bf16.mxu0 0
      %656 = vmatpush1.bf16.msra.mxu0 0
      %657 = vmatprep.subr.bf16.mxu0 0
      %658 = vmatpush1.bf16.msra.mxu0 0
      %659 = vmatprep.subr.bf16.mxu0 0
      %660 = vmatpush1.bf16.msra.mxu0 0
      %661 = vmatprep.subr.bf16.mxu0 0
      %662 = vmatpush1.bf16.msra.mxu0 0
      %663 = vmatprep.mubr.bf16.mxu0 0
      %664 = vmatmul.mubr.bf16.gmra.mrb[0].mxu0 %v615
      %v665 = vpop.f32.mrb[0].mxu0
      %v666 = vadd.f32 %v581, %v665
      %v667 = vpop.f32.mrb[0].mxu0
      %v668 = vpop.f32.mrb[0].mxu0
      %v669 = vadd.f32 %v581, %v668
      %v670 = vpop.f32.mrb[0].mxu0
      %671 = vmatprep.mubr.bf16.mxu0 0
      %672 = vmatmul.mubr.bf16.gmra.mrb[0].mxu0 %v616
      %v673 = vpop.f32.mrb[0].mxu0
      %v674 = vadd.f32 %v581, %v673
      %v675 = vpop.f32.mrb[0].mxu0
      %v676 = vpop.f32.mrb[0].mxu0
      %v677 = vadd.f32 %v581, %v676
      %v678 = vpop.f32.mrb[0].mxu0
      %679 = vmatprep.mubr.bf16.mxu0 0
      %680 = vmatmul.mubr.bf16.gmra.mrb[0].mxu0 %v617
      %v681 = vpop.f32.mrb[0].mxu0
      %v682 = vadd.f32 %v581, %v681
      %v683 = vpop.f32.mrb[0].mxu0
      %v684 = vpop.f32.mrb[0].mxu0
      %v685 = vadd.f32 %v581, %v684
      %v686 = vpop.f32.mrb[0].mxu0
      %687 = vmatprep.mubr.bf16.mxu0 0
      %688 = vmatmul.mubr.bf16.gmra.mrb[0].mxu0 %v618
      %v689 = vpop.f32.mrb[0].mxu0
      %v690 = vadd.f32 %v581, %v689
      %v691 = vpop.f32.mrb[0].mxu0
      %v692 = vpop.f32.mrb[0].mxu0
      %v693 = vadd.f32 %v581, %v692
      %v694 = vpop.f32.mrb[0].mxu0
      %695 = vmatprep.mubr.bf16.mxu0 0
      %696 = vmatmul.mubr.bf16.gmra.mrb[0].mxu0 %v619
      %v697 = vpop.f32.mrb[0].mxu0
      %v698 = vadd.f32 %v581, %v697
      %v699 = vpop.f32.mrb[0].mxu0
      %v700 = vpop.f32.mrb[0].mxu0
      %v701 = vadd.f32 %v581, %v700
      %v702 = vpop.f32.mrb[0].mxu0
      %703 = vmatprep.mubr.bf16.mxu0 0
      %704 = vmatmul.mubr.bf16.gmra.mrb[0].mxu0 %v620
      %v705 = vpop.f32.mrb[0].mxu0
      %v706 = vadd.f32 %v581, %v705
      %v707 = vpop.f32.mrb[0].mxu0
      %v708 = vpop.f32.mrb[0].mxu0
      %v709 = vadd.f32 %v581, %v708
      %v710 = vpop.f32.mrb[0].mxu0
      %711 = vmatprep.mubr.bf16.mxu0 0
      %712 = vmatmul.mubr.bf16.gmra.mrb[0].mxu0 %v621
      %v713 = vpop.f32.mrb[0].mxu0
      %v714 = vadd.f32 %v581, %v713
      %v715 = vpop.f32.mrb[0].mxu0
      %v716 = vpop.f32.mrb[0].mxu0
      %v717 = vadd.f32 %v581, %v716
      %v718 = vpop.f32.mrb[0].mxu0
      %719 = vmatprep.mubr.bf16.mxu0 0
      %720 = vmatmul.mubr.bf16.gmra.mrb[0].mxu0 %v622
      %v721 = vpop.f32.mrb[0].mxu0
      %v722 = vadd.f32 %v581, %v721
      %v723 = vpop.f32.mrb[0].mxu0
      %v724 = vpop.f32.mrb[0].mxu0
      %v725 = vadd.f32 %v581, %v724
      %v726 = vpop.f32.mrb[0].mxu0
      %727 = vdwg.mxu0
      %v728 = vmax.f32 %v666, 0.0
      %v729 = vmax.f32 %v669, 0.0
      %v730 = vmax.f32 %v674, 0.0
      %v731 = vmax.f32 %v677, 0.0
      %v732 = vmax.f32 %v682, 0.0
      %v733 = vmax.f32 %v685, 0.0
      %v734 = vmax.f32 %v690, 0.0
      %v735 = vmax.f32 %v693, 0.0
      %v736 = vmax.f32 %v698, 0.0
      %v737 = vmax.f32 %v701, 0.0
      %v738 = vmax.f32 %v706, 0.0
      %v739 = vmax.f32 %v709, 0.0
      %v740 = vmax.f32 %v714, 0.0
      %v741 = vmax.f32 %v717, 0.0
      %v742 = vmax.f32 %v722, 0.0
      %v743 = vmax.f32 %v725, 0.0
      %v744 = vld [vmem:[%s363] sm:$0xf]
      %v745 = vpack.c.bf16 %v729, %v728
      %v746 = vpack.c.bf16 %v731, %v730
      %v747 = vpack.c.bf16 %v733, %v732
      %v748 = vpack.c.bf16 %v735, %v734
      %v749 = vpack.c.bf16 %v737, %v736
      %v750 = vpack.c.bf16 %v739, %v738
      %v751 = vpack.c.bf16 %v741, %v740
      %v752 = vpack.c.bf16 %v743, %v742
      %753 = vmatprep.subr.bf16.mxu0 0
      %754 = vmatpush1.bf16.msra.mxu0 %v745
      %755 = vmatprep.subr.bf16.mxu0 0
      %756 = vmatpush1.bf16.msra.mxu0 %v746
      %757 = vmatprep.subr.bf16.mxu0 0
      %758 = vmatpush1.bf16.msra.mxu0 %v747
      %759 = vmatprep.subr.bf16.mxu0 0
      %760 = vmatpush1.bf16.msra.mxu0 %v748
      %761 = vmatprep.subr.bf16.mxu0 0
      %762 = vmatpush1.bf16.msra.mxu0 %v749
      %763 = vmatprep.subr.bf16.mxu0 0
      %764 = vmatpush1.bf16.msra.mxu0 %v750
      %765 = vmatprep.subr.bf16.mxu0 0
      %766 = vmatpush1.bf16.msra.mxu0 %v751
      %767 = vmatprep.subr.bf16.mxu0 0
      %768 = vmatpush1.bf16.msra.mxu0 %v752
      %769 = vmatprep.subr.bf16.mxu0 0
      %770 = vmatpush1.bf16.msra.mxu0 0
      %771 = vmatprep.subr.bf16.mxu0 0
      %772 = vmatpush1.bf16.msra.mxu0 0
      %773 = vmatprep.subr.bf16.mxu0 0
      %774 = vmatpush1.bf16.msra.mxu0 0
      %775 = vmatprep.subr.bf16.mxu0 0
      %776 = vmatpush1.bf16.msra.mxu0 0
      %777 = vmatprep.subr.bf16.mxu0 0
      %778 = vmatpush1.bf16.msra.mxu0 0
      %779 = vmatprep.subr.bf16.mxu0 0
      %780 = vmatpush1.bf16.msra.mxu0 0
      %781 = vmatprep.subr.bf16.mxu0 0
      %782 = vmatpush1.bf16.msra.mxu0 0
      %783 = vmatprep.subr.bf16.mxu0 0
      %784 = vmatpush1.bf16.msra.mxu0 0
      %785 = vmatprep.mubr.bf16.mxu0 0
      %786 = vmatmul.mubr.bf16.gmra.mrb[0].mxu0 %v744
      %v787 = vpop.f32.mrb[0].mxu0
      %v788 = vadd.f32 0.0, %v787
      %v789 = vpop.f32.mrb[0].mxu0
      %v790 = vpop.f32.mrb[0].mxu0
      %v791 = vpop.f32.mrb[0].mxu0
      %792 = vdwg.mxu0
      %v793 = vpack.c.bf16 %v788, %v788
      %v794 = vld [vmem:[%s5] sm:$0xf]
      %v795 = vld [vmem:[%s5 + $0x4] sm:$0xf]
      %v796 = vld [vmem:[%s5 + $0x8] sm:$0xf]
      %v797 = vld [vmem:[%s5 + $0xc] sm:$0xf]
      %v798 = vld [vmem:[%s6] sm:$0x1]
      %v800 = vlaneseq
      %v801 = vshrl.u32 %v800, 7
      %v802 = vsub.s32 0, %v801
      %v803 = vrot.slane %v798, %v802
      %v809 = vunpack.c.l.b16 %v794
      %v810 = vunpack.c.l.b16 %v795
      %v811 = vunpack.c.l.b16 %v796
      %v812 = vunpack.c.l.b16 %v797
      %v813 = vpack.c.b16 %v810, %v809
      %v814 = vpack.c.b16 %v812, %v811
      %vm817 = vcmask 261120
      %v819 = vsel %vm817, %v793, 0
      %821 = vmatprep.subr.bf16.mxu0 0
      %822 = vmatpush1.bf16.msra.mxu0 %v813
      %823 = vmatprep.subr.bf16.mxu0 0
      %824 = vmatpush1.bf16.msra.mxu0 %v814
      %825 = vmatprep.subr.bf16.mxu0 0
      %826 = vmatpush1.bf16.msra.mxu0 0
      %827 = vmatprep.subr.bf16.mxu0 0
      %828 = vmatpush1.bf16.msra.mxu0 0
      %829 = vmatprep.subr.bf16.mxu0 0
      %830 = vmatpush1.bf16.msra.mxu0 0
      %831 = vmatprep.subr.bf16.mxu0 0
      %832 = vmatpush1.bf16.msra.mxu0 0
      %833 = vmatprep.subr.bf16.mxu0 0
      %834 = vmatpush1.bf16.msra.mxu0 0
      %835 = vmatprep.subr.bf16.mxu0 0
      %836 = vmatpush1.bf16.msra.mxu0 0
      %837 = vmatprep.subr.bf16.mxu0 0
      %838 = vmatpush1.bf16.msra.mxu0 0
      %839 = vmatprep.subr.bf16.mxu0 0
      %840 = vmatpush1.bf16.msra.mxu0 0
      %841 = vmatprep.subr.bf16.mxu0 0
      %842 = vmatpush1.bf16.msra.mxu0 0
      %843 = vmatprep.subr.bf16.mxu0 0
      %844 = vmatpush1.bf16.msra.mxu0 0
      %845 = vmatprep.subr.bf16.mxu0 0
      %846 = vmatpush1.bf16.msra.mxu0 0
      %847 = vmatprep.subr.bf16.mxu0 0
      %848 = vmatpush1.bf16.msra.mxu0 0
      %849 = vmatprep.subr.bf16.mxu0 0
      %850 = vmatpush1.bf16.msra.mxu0 0
      %851 = vmatprep.subr.bf16.mxu0 0
      %852 = vmatpush1.bf16.msra.mxu0 0
      %853 = vmatprep.mubr.bf16.mxu0 0
      %854 = vmatmul.mubr.bf16.gmra.mrb[0].mxu0 %v819
      %v855 = vpop.f32.mrb[0].mxu0
      %v856 = vadd.f32 %v803, %v855
      %v857 = vpop.f32.mrb[0].mxu0
      %v858 = vpop.f32.mrb[0].mxu0
      %v859 = vpop.f32.mrb[0].mxu0
      %860 = vdwg.mxu0
      %v861 = vmax.f32 %v856, 0.0
      %v862 = vpack.c.bf16 %v861, %v861
      %v863 = vld [vmem:[%s7] sm:$0xf]
      %v864 = vld [vmem:[%s7 + $0x4] sm:$0xf]
      %v865 = vld [vmem:[%s7 + $0x8] sm:$0xf]
      %v866 = vld [vmem:[%s7 + $0xc] sm:$0xf]
      %v867 = vld [vmem:[%s8] sm:$0x1]
      %v869 = vlaneseq
      %v870 = vshrl.u32 %v869, 7
      %v871 = vsub.s32 0, %v870
      %v872 = vrot.slane %v867, %v871
      %v878 = vunpack.c.l.b16 %v863
      %v879 = vunpack.c.l.b16 %v864
      %v880 = vunpack.c.l.b16 %v865
      %v881 = vunpack.c.l.b16 %v866
      %v882 = vpack.c.b16 %v879, %v878
      %v883 = vpack.c.b16 %v881, %v880
      %v887 = vsel %vm817, %v862, 0
      %889 = vmatprep.subr.bf16.mxu0 0
      %890 = vmatpush1.bf16.msra.mxu0 %v882
      %891 = vmatprep.subr.bf16.mxu0 0
      %892 = vmatpush1.bf16.msra.mxu0 %v883
      %893 = vmatprep.subr.bf16.mxu0 0
      %894 = vmatpush1.bf16.msra.mxu0 0
      %895 = vmatprep.subr.bf16.mxu0 0
      %896 = vmatpush1.bf16.msra.mxu0 0
      %897 = vmatprep.subr.bf16.mxu0 0
      %898 = vmatpush1.bf16.msra.mxu0 0
      %899 = vmatprep.subr.bf16.mxu0 0
      %900 = vmatpush1.bf16.msra.mxu0 0
      %901 = vmatprep.subr.bf16.mxu0 0
      %902 = vmatpush1.bf16.msra.mxu0 0
      %903 = vmatprep.subr.bf16.mxu0 0
      %904 = vmatpush1.bf16.msra.mxu0 0
      %905 = vmatprep.subr.bf16.mxu0 0
      %906 = vmatpush1.bf16.msra.mxu0 0
      %907 = vmatprep.subr.bf16.mxu0 0
      %908 = vmatpush1.bf16.msra.mxu0 0
      %909 = vmatprep.subr.bf16.mxu0 0
      %910 = vmatpush1.bf16.msra.mxu0 0
      %911 = vmatprep.subr.bf16.mxu0 0
      %912 = vmatpush1.bf16.msra.mxu0 0
      %913 = vmatprep.subr.bf16.mxu0 0
      %914 = vmatpush1.bf16.msra.mxu0 0
      %915 = vmatprep.subr.bf16.mxu0 0
      %916 = vmatpush1.bf16.msra.mxu0 0
      %917 = vmatprep.subr.bf16.mxu0 0
      %918 = vmatpush1.bf16.msra.mxu0 0
      %919 = vmatprep.subr.bf16.mxu0 0
      %920 = vmatpush1.bf16.msra.mxu0 0
      %921 = vmatprep.mubr.bf16.mxu0 0
      %922 = vmatmul.mubr.bf16.gmra.mrb[0].mxu0 %v887
      %v923 = vpop.f32.mrb[0].mxu0
      %v924 = vadd.f32 %v872, %v923
      %v925 = vpop.f32.mrb[0].mxu0
      %v926 = vpop.f32.mrb[0].mxu0
      %v927 = vpop.f32.mrb[0].mxu0
      %928 = vdwg.mxu0
      %929 = vst [vmem:[%s367] sm:$0xff] %v924
      %p930 = scmp.lt.s32.totalorder %s20, 1
      %s931 = scalar_select %p930, %s20, 1
      %s932 = smul.addr %s931, 8
      %s933 = scalar_lea.vmem %s9, %s932
      // Predicated region
      $region57: #{gnn_solver_policy_batch.1} parent=55 // pred_check
        %p934 = pneg %p242
      $region58: #{gnn_solver_policy_batch.1} parent=55 // pred_check_branch
        %936 = sbr.rel (%p934) target = $region60
      $region59: #{gnn_solver_policy_batch.1} parent=55 // pred_region
        _
      $region60: #{gnn_solver_policy_batch.1} parent=55 // pred_fallthru
        _
    $region56: #{gnn_solver_policy_batch.1} parent=5 // pred_fallthru
      _
    %p937 = scmp.le.s32.totalorder 2, %s15
    // Predicated region
    $region61: #{gnn_solver_policy_batch.1} parent=5 // pred_check
      %p938 = pneg %p937
    $region62: #{gnn_solver_policy_batch.1} parent=5 // pred_check_branch
      %940 = sbr.rel (%p938) target = $region64
    $region63: #{gnn_solver_policy_batch.1} parent=5 // pred_region
      %s941 = ssub.s32 %s15, 2
      // Predicated region
      $region65: #{gnn_solver_policy_batch.1} parent=63 // pred_check
        %p942 = pneg %p248
      $region66: #{gnn_solver_policy_batch.1} parent=63 // pred_check_branch
        %944 = sbr.rel (%p942) target = $region68
      $region67: #{gnn_solver_policy_batch.1} parent=63 // pred_region
        %p945 = scmp.lt.s32.totalorder %s21, 1
        %s946 = scalar_select %p945, %s21, 1
        %s947 = smul.addr %s946, 8
        %s948 = scalar_lea.vmem %s9, %s947
      $region68: #{gnn_solver_policy_batch.1} parent=63 // pred_fallthru
        _
    $region64: #{gnn_solver_policy_batch.1} parent=5 // pred_fallthru
      _
  $region6: #{gnn_solver_policy_batch.1} parent=0 // loop_footer
    %s19 = sadd.s32 1, %s15
  $region7: #{gnn_solver_policy_batch.1} parent=0 // loop_footer_branch
    %14 = sbr.rel target = $region3
  $region8: #{gnn_solver_policy_batch.1} parent=0 // loop_exit
    _

</llo_original>
